<compile_context>
chip_gen: v7x
topology: tpu7x:2x2x1
jax: 0.10.0
libtpu: 0.0.40
codegen_flags: <defaults>
</compile_context>

<pallas_src>
import functools

import jax
import jax.numpy as jnp
from jax.experimental import pallas as pl
from jax.experimental.pallas import tpu as pltpu

_MIB = 1 << 20


def _round_up(x, m):
    return ((x + m - 1) // m) * m


def _pick_tile(dim, target, align):
    """Largest multiple-of-`align` divisor of `dim` that is <= target, else full dim."""
    if dim <= target:
        return dim
    t = (target // align) * align
    while t >= align:
        if dim % t == 0:
            return t
        t -= align
    return dim


def _resident_spec(shape, index_map, single_buffer):
    """Constant-index BlockSpec; optionally single-buffered (no double buffer)."""
    if single_buffer and hasattr(pl, "Buffered"):
        try:
            return pl.BlockSpec(shape, index_map,
                                pipeline_mode=pl.Buffered(1)), True
        except TypeError:  # jax version without pipeline_mode support
            pass
    return pl.BlockSpec(shape, index_map), False


# ----------------------------------------------------------------------------
# Kernels
# ----------------------------------------------------------------------------
def _qkv_resident_kernel(x_ref, w_ref, b_ref, o_ref):
    # x_ref: (tm, K) input dtype   w_ref: (K, N) bf16 resident   b_ref: (1, N) f32
    # Per-tile bf16 cast of the activations hides under the MXU issue slots.
    x = x_ref[...].astype(jnp.bfloat16)
    acc = jnp.dot(x, w_ref[...], preferred_element_type=jnp.float32)
    o_ref[...] = (acc + b_ref[...]).astype(o_ref.dtype)


def _qkv_streamed_kernel(x_ref, w_ref, b_ref, o_ref, acc_ref):
    # Fallback for weights too large to keep resident: K-innermost reduction.
    k = pl.program_id(2)

    @pl.when(k == 0)
    def _():
        acc_ref[...] = jnp.zeros_like(acc_ref)

    acc_ref[...] += jnp.dot(x_ref[...].astype(jnp.bfloat16), w_ref[...],
                            preferred_element_type=jnp.float32)

    @pl.when(k == pl.num_programs(2) - 1)
    def _():
        o_ref[...] = (acc_ref[...] + b_ref[...]).astype(o_ref.dtype)


# ----------------------------------------------------------------------------
# Wrapper
# ----------------------------------------------------------------------------
def c_attn_matmul(x2d, w_bf16, b, *, out_dtype=jnp.bfloat16,
                  tm_target=512, resident_budget_bytes=40 * _MIB):
    """Fused qkv projection: (M, C) @ (C, 3C) + (3C,) -> (M, 3C)."""
    M, K = x2d.shape
    K2, N = w_bf16.shape
    assert K == K2 and b.shape == (N,)

    # Weight should be pre-cast to bf16 once at parameter-load time (outside
    # the per-step jit); this is a no-op in that case.
    w_bf16 = w_bf16.astype(jnp.bfloat16)
    b2d = b.astype(jnp.float32).reshape(1, N)

    # Row tiling over M only.  Pad M to a tile multiple so the tile choice is
    # shape-independent (no full-M fallback block / VMEM blow-up).
    tm = min(tm_target, _round_up(M, 8))
    m_pad = _round_up(M, tm)
    if m_pad != M:
        x2d = jnp.pad(x2d, ((0, m_pad - M), (0, 0)))
    grid_m = m_pad // tm  # for typical M this is >= 2, so v7x's 2 TCs split it

    x_bytes = jnp.dtype(x2d.dtype).itemsize
    o_bytes = jnp.dtype(out_dtype).itemsize
    w_bytes = K * N * 2

    # Single-buffer the resident weight once it is large enough that double
    # buffering would threaten the v7x (64 MiB/TC, 32 MiB scoped default)
    # budget; its block index is constant so it is DMA'd exactly once anyway.
    want_single = w_bytes > 8 * _MIB
    w_spec, w_single = _resident_spec((K, N), lambda i: (0, 0), want_single)
    b_spec = pl.BlockSpec((1, N), lambda i: (0, 0))

    resident_vmem = (w_bytes * (1 if w_single else 2)   # resident weight
                     + 2 * tm * K * x_bytes             # activation double-buffer
                     + 2 * tm * N * o_bytes             # output double-buffer
                     + 2 * N * 4)                       # bias

    if resident_vmem <= resident_budget_bytes:
        # --------------------------- resident-weight path --------------------
        cp_kwargs = dict(dimension_semantics=("parallel",))
        if resident_vmem > 12 * _MIB:  # above the smallest scoped default (v5e)
            cp_kwargs["vmem_limit_bytes"] = int(resident_vmem + 4 * _MIB)

        cost = pl.CostEstimate(
            flops=2 * m_pad * K * N,
            transcendentals=0,
            bytes_accessed=m_pad * K * x_bytes + w_bytes + N * 4
                           + m_pad * N * o_bytes)

        out = pl.pallas_call(
            _qkv_resident_kernel,
            out_shape=jax.ShapeDtypeStruct((m_pad, N), out_dtype),
            grid_spec=pltpu.PrefetchScalarGridSpec(
                num_scalar_prefetch=0,
                grid=(grid_m,),
                in_specs=[
                    pl.BlockSpec((tm, K), lambda i: (i, 0)),  # activations, read once
                    w_spec,                                   # resident weight
                    b_spec,                                   # resident bias
                ],
                out_specs=pl.BlockSpec((tm, N), lambda i: (i, 0)),
            ),
            compiler_params=pltpu.CompilerParams(**cp_kwargs),
            cost_estimate=cost,
        )(x2d, w_bf16, b2d)
    else:
        # --------------------------- streamed fallback -----------------------
        # Only reached when the bf16 weight alone exceeds the VMEM budget
        # (very large C).  K-innermost reduction with an f32 accumulator.
        # TODO(synk): deepen pipelining on the streamed weight (pl.Buffered(3))
        # and add tail masking for awkward N/K once this path is exercised.
        tn = _pick_tile(N, 512, 128)
        tk = _pick_tile(K, 512, 128)
        grid = (grid_m, N // tn, K // tk)

        vmem_need = (2 * tm * tk * x_bytes + 2 * tk * tn * 2 + 2 * tn * 4
                     + 2 * tm * tn * o_bytes + tm * tn * 4)
        cp_kwargs = dict(
            dimension_semantics=("parallel", "parallel", "arbitrary"))
        if vmem_need > 12 * _MIB:
            cp_kwargs["vmem_limit_bytes"] = int(vmem_need + 4 * _MIB)

        cost = pl.CostEstimate(
            flops=2 * m_pad * K * N,
            transcendentals=0,
            bytes_accessed=m_pad * K * x_bytes * (N // tn)
                           + w_bytes * (m_pad // tm) + N * 4
                           + m_pad * N * o_bytes)

        out = pl.pallas_call(
            _qkv_streamed_kernel,
            out_shape=jax.ShapeDtypeStruct((m_pad, N), out_dtype),
            grid_spec=pltpu.PrefetchScalarGridSpec(
                num_scalar_prefetch=0,
                grid=grid,
                in_specs=[
                    pl.BlockSpec((tm, tk), lambda i, j, k: (i, k)),
                    pl.BlockSpec((tk, tn), lambda i, j, k: (k, j)),
                    pl.BlockSpec((1, tn), lambda i, j, k: (0, j)),
                ],
                out_specs=pl.BlockSpec((tm, tn), lambda i, j, k: (i, j)),
                scratch_shapes=[pltpu.VMEM((tm, tn), jnp.float32)],
            ),
            compiler_params=pltpu.CompilerParams(**cp_kwargs),
            cost_estimate=cost,
        )(x2d, w_bf16, b2d)

    return out[:M] if m_pad != M else out


@functools.partial(jax.jit, static_argnums=(3,))
def attention_forward(x, w_attn_bf16, b_attn, n_head):
    """Replicates Attention.forward: returns (q, k, v, B, T, C).

    q/k/v each have shape (B, n_head, T, C // n_head).
    """
    B, T, C = x.shape
    hd = C // n_head

    x2d = x.reshape(B * T, C)
    qkv = c_attn_matmul(x2d, w_attn_bf16, b_attn)          # (B*T, 3C) bf16
    qkv = qkv.reshape(B, T, 3 * C)

    q, k, v = jnp.split(qkv, 3, axis=2)                    # cheap slices, (B, T, C)
    # .view(B, T, H, hd).transpose(1, 2) -> (B, H, T, hd), per module contract.
    # TODO(synk): have the downstream attention-score kernel consume the
    # (B, T, H, hd) layout directly via its q/k/v BlockSpec index_maps so this
    # separate HBM permutation pass disappears (hd < 128 here, so scattering
    # from the projection kernel would hit lane-sparse masked stores).
    q = q.reshape(B, T, n_head, hd).transpose(0, 2, 1, 3)
    k = k.reshape(B, T, n_head, hd).transpose(0, 2, 1, 3)
    v = v.reshape(B, T, n_head, hd).transpose(0, 2, 1, 3)
    return q, k, v, B, T, C


if __name__ == "__main__":
    # Small config consistent with the module: n_embd % n_head == 0.
    B, T, C, n_head = 2, 8, 32, 4

    key = jax.random.PRNGKey(0)
    kx, kw, kb = jax.random.split(key, 3)

    x = jax.random.normal(kx, (B, T, C), dtype=jnp.float32)

    # nn.Linear(C, 3C): weight (3C, C), bias (3C,).  y = x @ W.T + b.
    w_torch_layout = jax.random.normal(kw, (3 * C, C), dtype=jnp.float32) * 0.02
    b_attn = jax.random.normal(kb, (3 * C,), dtype=jnp.float32) * 0.02
    w_attn = w_torch_layout.T                               # (C, 3C) for x @ W.T
    # Pre-cast the weight to bf16 ONCE at parameter-load time (outside the jit)
    # so no per-step full-array cast pass is ever emitted.
    w_attn_bf16 = w_attn.astype(jnp.bfloat16)

    # Note: c_proj / dropout / rope / alibi are constructed in __init__ but are
    # NOT used in this forward(), so they are not part of the kernel path.

    q, k, v, Bo, To, Co = attention_forward(x, w_attn_bf16, b_attn, n_head)
    jax.block_until_ready((q, k, v))

    # Reference check (inputs quantized to bf16 to match the kernel's operands;
    # accumulation in f32, output compared in f32 with bf16-level tolerance).
    x_bq = x.astype(jnp.bfloat16).astype(jnp.float32)
    w_bq = w_attn.astype(jnp.bfloat16).astype(jnp.float32)
    qkv_ref = x_bq.reshape(B * T, C) @ w_bq + b_attn
    qkv_ref = qkv_ref.reshape(B, T, 3 * C)
    q_ref, k_ref, v_ref = jnp.split(qkv_ref, 3, axis=2)
    hd = C // n_head
    q_ref = q_ref.reshape(B, T, n_head, hd).transpose(0, 2, 1, 3)
    k_ref = k_ref.reshape(B, T, n_head, hd).transpose(0, 2, 1, 3)
    v_ref = v_ref.reshape(B, T, n_head, hd).transpose(0, 2, 1, 3)

    assert q.shape == (B, n_head, T, hd)
    assert k.shape == (B, n_head, T, hd)
    assert v.shape == (B, n_head, T, hd)
    assert (Bo, To, Co) == (B, T, C)
    assert jnp.allclose(q.astype(jnp.float32), q_ref, atol=2e-2, rtol=2e-2)
    assert jnp.allclose(k.astype(jnp.float32), k_ref, atol=2e-2, rtol=2e-2)
    assert jnp.allclose(v.astype(jnp.float32), v_ref, atol=2e-2, rtol=2e-2)

    print("KERNEL_OK")
</pallas_src>

<mosaic_0001>
module attributes {stable_mosaic.version = 11 : i64} {
  func.func @_qkv_resident_kernel(%arg0: i32, %arg1: memref<16x32xf32, #tpu.memory_space<vmem>>, %arg2: memref<32x96xbf16, #tpu.memory_space<vmem>>, %arg3: memref<1x96xf32, #tpu.memory_space<vmem>>, %arg4: memref<16x96xbf16, #tpu.memory_space<vmem>>) attributes {dimension_semantics = [#tpu.dimension_semantics<parallel>], iteration_bounds = array<i64: 1>, scalar_prefetch = 0 : i64, scratch_operands = 0 : i64, tpu.core_type = #tpu.core_type<tc>, window_params = [{transform_indices = @transform_0, window_bounds = array<i64: 16, 32>}, {pipeline_mode = #tpu.pipeline_mode<synchronous>, transform_indices = @transform_1, window_bounds = array<i64: 32, 96>}, {pipeline_mode = #tpu.pipeline_mode<synchronous>, transform_indices = @transform_2, window_bounds = array<i64: 1, 96>}, {transform_indices = @transform_3, window_bounds = array<i64: 16, 96>}]} {
    %c0 = arith.constant 0 : index
    %c0_0 = arith.constant 0 : index
    %0 = vector.load %arg1[%c0, %c0_0] : memref<16x32xf32, #tpu.memory_space<vmem>>, vector<16x32xf32>
    %1 = arith.truncf %0 : vector<16x32xf32> to vector<16x32xbf16>
    %c0_1 = arith.constant 0 : index
    %c0_2 = arith.constant 0 : index
    %2 = vector.load %arg2[%c0_1, %c0_2] : memref<32x96xbf16, #tpu.memory_space<vmem>>, vector<32x96xbf16>
    %cst = arith.constant dense<0.000000e+00> : vector<16x96xf32>
    %3 = tpu.matmul %1, %2, %cst {dimension_numbers = #tpu.dot_dimension_numbers<[1], [0], [0], [1], [0, 0, 1, 1], [], []>} : vector<16x32xbf16>, vector<32x96xbf16>, vector<16x96xf32> -> vector<16x96xf32>
    %c0_3 = arith.constant 0 : index
    %c0_4 = arith.constant 0 : index
    %4 = vector.load %arg3[%c0_3, %c0_4] : memref<1x96xf32, #tpu.memory_space<vmem>>, vector<1x96xf32>
    %5 = vector.broadcast %4 : vector<1x96xf32> to vector<16x96xf32>
    %6 = arith.addf %3, %5 : vector<16x96xf32>
    %7 = arith.truncf %6 : vector<16x96xf32> to vector<16x96xbf16>
    %c0_5 = arith.constant 0 : index
    %c0_6 = arith.constant 0 : index
    %8 = vector.load %arg4[%c0_5, %c0_6] : memref<16x96xbf16, #tpu.memory_space<vmem>>, vector<16x96xbf16>
    tpu.vector_store %arg4[%c0_5, %c0_6], %7 {strides = array<i32>} : memref<16x96xbf16, #tpu.memory_space<vmem>>, vector<16x96xbf16>,
    return
  }
  func.func @transform_0(%arg0: i32) -> (i32, i32) {
    %c0_i32 = arith.constant 0 : i32
    %c0_i32_0 = arith.constant 0 : i32
    return %arg0, %c0_i32 : i32, i32
  }
  func.func @transform_1(%arg0: i32) -> (i32, i32) {
    %c0_i32 = arith.constant 0 : i32
    %c0_i32_0 = arith.constant 0 : i32
    %c0_i32_1 = arith.constant 0 : i32
    return %c0_i32, %c0_i32_0 : i32, i32
  }
  func.func @transform_2(%arg0: i32) -> (i32, i32) {
    %c0_i32 = arith.constant 0 : i32
    %c0_i32_0 = arith.constant 0 : i32
    %c0_i32_1 = arith.constant 0 : i32
    return %c0_i32, %c0_i32_0 : i32, i32
  }
  func.func @transform_3(%arg0: i32) -> (i32, i32) {
    %c0_i32 = arith.constant 0 : i32
    %c0_i32_0 = arith.constant 0 : i32
    return %arg0, %c0_i32 : i32, i32
  }
}

</mosaic_0001>

<llo_original>
// kernel: attention_forward.1
$region0: #{attention_forward.1}
  #allocation0 [shape = 'u32[]', space=smem, size = 0x4, offset = 0x4, fixed_abs, tag = 'smem constant byte address 0x4 - core index']
  #allocation1 [shape = 'u32[144,128]{1,0:T(1,128)}', space=vmem, size = 0x12000, scoped, tag = 'internal scratch']
  %s0 = inlined_call_operand.hbm [shape: f32[16,32], index: 0, kind: input, shape index: {}]
  %s1 = inlined_call_operand.hbm [shape: bf16[32,96], index: 1, kind: input, shape index: {}]
  %s2 = inlined_call_operand.vmem [shape: f32[1,96], index: 2, kind: input, shape index: {}]
  %s3 = inlined_call_operand.vmem [shape: bf16[16,96], index: 3, kind: output, shape index: {}]
  %s4 = sld [smem:[#allocation0]]
  $region30: #{attention_forward.1} parent=0
    _
  %s6 = ssub.s32 1, %s4
  %s7 = scalar_select 0, %s6, %s4
  $region1: #{attention_forward.1} parent=0
    #allocation2 [shape = 'u8[8192]{0}', space=vmem, size = 0x2000, scoped, tag = 'input window, operand 0, single buffered']
    #allocation3 [shape = 's32[1]{0}', space=sflag, size = 0x4, scoped, tag = 'scoped memory for attention_forward.1']
    #allocation4 [shape = 'u8[8192]{0}', space=vmem, size = 0x2000, scoped, tag = 'input window, operand 1, single buffered']
    #allocation5 [shape = 's32[1]{0}', space=sflag, size = 0x4, scoped, tag = 'scoped memory for attention_forward.1']
    %8 = vsyncpa [#allocation3], 0
    %9 = vsyncpa [#allocation5], 0
    // Predicated region
    $region2: #{attention_forward.1} parent=1 // pred_check
      _
    $region3: #{attention_forward.1} parent=1 // pred_check_branch
      %11 = sbr.rel (0) target = $region5
    $region4: #{attention_forward.1} parent=1 // pred_region
      %s13 = ssub.s32 256, 256
      %14 = vsyncadd [#allocation3], %s13
      %s15 = sshll.u32 [#allocation2], 4
      %s16 = int_to_ptr.vmem [resolvable:$true] %s15
      %21 = dma.hbm_to_vmem [thread:$0]  %s0, 256, %s16, [#allocation3], 128, 128, 8
    $region5: #{attention_forward.1} parent=1 // pred_fallthru
      _
    // Predicated region
    $region6: #{attention_forward.1} parent=1 // pred_check
      _
    $region7: #{attention_forward.1} parent=1 // pred_check_branch
      %23 = sbr.rel (0) target = $region9
    $region8: #{attention_forward.1} parent=1 // pred_region
      %s25 = ssub.s32 256, 256
      %26 = vsyncadd [#allocation5], %s25
      %s27 = sshll.u32 [#allocation4], 4
      %s28 = int_to_ptr.vmem [resolvable:$true] %s27
      %33 = dma.hbm_to_vmem [thread:$0]  %s1, 256, %s28, [#allocation5], 64, 64, 4
    $region9: #{attention_forward.1} parent=1 // pred_fallthru
      _
    // Predicated region
    $region10: #{attention_forward.1} parent=1 // pred_check
      _
    $region11: #{attention_forward.1} parent=1 // pred_check_branch
      %35 = sbr.rel (0) target = $region13
    $region12: #{attention_forward.1} parent=1 // pred_region
      _
    $region13: #{attention_forward.1} parent=1 // pred_fallthru
      _
    // Predicated region
    $region14: #{attention_forward.1} parent=1 // pred_check
      _
    $region15: #{attention_forward.1} parent=1 // pred_check_branch
      %37 = sbr.rel (0) target = $region17
    $region16: #{attention_forward.1} parent=1 // pred_region
      %38 = dma.done [#allocation3], 256
    $region17: #{attention_forward.1} parent=1 // pred_fallthru
      _
    // Predicated region
    $region18: #{attention_forward.1} parent=1 // pred_check
      _
    $region19: #{attention_forward.1} parent=1 // pred_check_branch
      %40 = sbr.rel (0) target = $region21
    $region20: #{attention_forward.1} parent=1 // pred_region
      %41 = dma.done [#allocation5], 256
    $region21: #{attention_forward.1} parent=1 // pred_fallthru
      _
    %v43 = vld [vmem:[#allocation2] sm:$0xff]
    %v44 = vld [vmem:[#allocation2 + $0x8] sm:$0xff]
    %v45 = vpack.c.bf16 %v44, %v43
    %v46 = vld [vmem:[#allocation4] sm:$0xf]
    %v47 = vld [vmem:[#allocation4 + $0x4] sm:$0xf]
    %v48 = vld [vmem:[#allocation4 + $0x8] sm:$0xf]
    %v49 = vld [vmem:[#allocation4 + $0xc] sm:$0xf]
    %v50 = vld [vmem:[%s2] sm:$0x1]
    %v52 = vlaneseq
    %v53 = vshrl.u32 %v52, 7
    %v54 = vsub.s32 0, %v53
    %v55 = vrot.slane %v50, %v54
    %v61 = vunpack.c.l.b16 %v46
    %v62 = vunpack.c.l.b16 %v47
    %v63 = vunpack.c.l.b16 %v48
    %v64 = vunpack.c.l.b16 %v49
    %v65 = vpack.c.b16 %v62, %v61
    %v66 = vpack.c.b16 %v64, %v63
    %vm69 = vcmask 261120
    %v71 = vsel %vm69, %v45, 0
    %73 = vmatprep.subr.bf16.mxu0 0
    %74 = vmatpush1.bf16.msra.mxu0 %v65
    %75 = vmatprep.subr.bf16.mxu0 0
    %76 = vmatpush1.bf16.msra.mxu0 %v66
    %77 = vmatprep.subr.bf16.mxu0 0
    %78 = vmatpush1.bf16.msra.mxu0 0
    %79 = vmatprep.subr.bf16.mxu0 0
    %80 = vmatpush1.bf16.msra.mxu0 0
    %81 = vmatprep.subr.bf16.mxu0 0
    %82 = vmatpush1.bf16.msra.mxu0 0
    %83 = vmatprep.subr.bf16.mxu0 0
    %84 = vmatpush1.bf16.msra.mxu0 0
    %85 = vmatprep.subr.bf16.mxu0 0
    %86 = vmatpush1.bf16.msra.mxu0 0
    %87 = vmatprep.subr.bf16.mxu0 0
    %88 = vmatpush1.bf16.msra.mxu0 0
    %89 = vmatprep.subr.bf16.mxu0 0
    %90 = vmatpush1.bf16.msra.mxu0 0
    %91 = vmatprep.subr.bf16.mxu0 0
    %92 = vmatpush1.bf16.msra.mxu0 0
    %93 = vmatprep.subr.bf16.mxu0 0
    %94 = vmatpush1.bf16.msra.mxu0 0
    %95 = vmatprep.subr.bf16.mxu0 0
    %96 = vmatpush1.bf16.msra.mxu0 0
    %97 = vmatprep.subr.bf16.mxu0 0
    %98 = vmatpush1.bf16.msra.mxu0 0
    %99 = vmatprep.subr.bf16.mxu0 0
    %100 = vmatpush1.bf16.msra.mxu0 0
    %101 = vmatprep.subr.bf16.mxu0 0
    %102 = vmatpush1.bf16.msra.mxu0 0
    %103 = vmatprep.subr.bf16.mxu0 0
    %104 = vmatpush1.bf16.msra.mxu0 0
    %105 = vmatprep.mubr.bf16.mxu0 0
    %106 = vmatmul.mubr.bf16.gmra.mrb[0].mxu0 %v71
    %v107 = vpop.f32.mrb[0].mxu0
    %v108 = vadd.f32 %v55, %v107
    %v109 = vpop.f32.mrb[0].mxu0
    %v110 = vpop.f32.mrb[0].mxu0
    %v111 = vadd.f32 %v55, %v110
    %v112 = vpop.f32.mrb[0].mxu0
    %113 = vdwg.mxu0
    %v114 = vpack.c.bf16 %v111, %v108
    %v116 = vunpack.c.l.b16 %v114
    %v117 = vunpack.c.h.b16 %v114
    %v118 = vpack.c.b16 %v116, %v116
    %v119 = vpack.c.b16 %v117, %v117
    %vm122 = vcmask 781312
    %123 = vst.msk [vmem:[%s3] sm:$0xf] %vm122, %v118
    %124 = vst.msk [vmem:[%s3 + $0x4] sm:$0xf] %vm122, %v119
    // Predicated region
    $region22: #{attention_forward.1} parent=1 // pred_check
      _
    $region23: #{attention_forward.1} parent=1 // pred_check_branch
      %126 = sbr.rel (0) target = $region25
    $region24: #{attention_forward.1} parent=1 // pred_region
      _
    $region25: #{attention_forward.1} parent=1 // pred_fallthru
      _
    // Predicated region
    $region26: #{attention_forward.1} parent=1 // pred_check
      _
    $region27: #{attention_forward.1} parent=1 // pred_check_branch
      %128 = sbr.rel (0) target = $region29
    $region28: #{attention_forward.1} parent=1 // pred_region
      _
    $region29: #{attention_forward.1} parent=1 // pred_fallthru
      _
    %129 = vsyncpa [#allocation3], 1
    %130 = vsyncpa [#allocation5], 1

</llo_original>
